<compile_context>
chip_gen: v5e
topology: v5e:2x2
jax: 0.10.0
libtpu: 0.0.40
codegen_flags: <defaults>
</compile_context>

<pallas_src>
import functools

import numpy as np
import jax
import jax.numpy as jnp
from jax.experimental import pallas as pl
from jax.experimental.pallas import tpu as pltpu


def _round_up(x: int, m: int) -> int:
    return ((x + m - 1) // m) * m


def make_fused_basis(filter_length: int, hop_length: int):
    """Fused, lane-padded forward Fourier basis (same math as the torch module __init__).

    Returns (basis, cutoff, cpad, kw) where basis has shape (kw, 2*cpad):
      columns [0, cutoff)          -> real projection
      columns [cpad, cpad+cutoff)  -> imag projection
    kw = ceil(filter_length / hop) * hop; rows beyond filter_length (and the extra
    columns) are zero, so frames may safely carry a few trailing samples past K.
    """
    K, hop = filter_length, hop_length
    cutoff = K // 2 + 1
    cpad = _round_up(cutoff, 128)
    r = pl.cdiv(K, hop)
    kw = r * hop

    fourier = np.fft.fft(np.eye(K))
    fb = np.vstack([np.real(fourier[:cutoff, :]),
                    np.imag(fourier[:cutoff, :])]).astype(np.float32)   # (2*cutoff, K)

    fused = np.zeros((kw, 2 * cpad), np.float32)
    fused[:K, :cutoff] = fb[:cutoff, :].T                # real part of forward_basis
    fused[:K, cpad:cpad + cutoff] = fb[cutoff:, :].T     # imag part of forward_basis
    return jnp.asarray(fused), cutoff, cpad, kw


def _stft_mag_kernel(frames_ref, basis_ref, out_ref, *, cpad):
    # frames_ref: (1, TM, KW)     frame rows [i*TM, (i+1)*TM), each row = KW samples
    # basis_ref:  (KW, 2*cpad)    fused real|imag basis, VMEM resident
    # out_ref:    (1, cpad, TM)   transposed, lane-dense magnitude tile
    f = frames_ref[0]                                                   # (TM, KW)
    acc = jnp.dot(f, basis_ref[...], preferred_element_type=jnp.float32)  # one K-deep dot
    real = acc[:, :cpad]
    imag = acc[:, cpad:]
    mag = jnp.sqrt(real * real + imag * imag)                           # (TM, cpad)
    out_ref[0] = mag.T                                                  # XLU transpose


def stft_magnitude(x, filter_length: int, hop_length: int, *, tile_m: int = 512):
    """Equivalent of STFT.forward: x of shape (T,) or (B, T) -> (B, cutoff, L)."""
    if x.ndim == 1:
        x = x[None, :]
    x = x.astype(jnp.float32)
    B, T = x.shape
    K, hop = filter_length, hop_length

    basis, cutoff, cpad, kw = make_fused_basis(K, hop)
    r = kw // hop

    # F.conv1d(stride=hop, padding=K, kernel=K) output length.
    L = (T + 2 * K - K) // hop + 1

    # Frame-tile size: multiple of 128 (lane-dense transposed store), capped for small L.
    tm = min(tile_m, _round_up(L, 128))
    n_tiles = pl.cdiv(L, tm)
    l_pad = n_tiles * tm

    # Zero-padded signal long enough for frame l_pad - 1 (left pad = K, as in conv1d).
    total = (l_pad - 1) * hop + kw
    pad_left = K
    pad_right = total - T - pad_left
    assert pad_right >= 0, (total, T, pad_left)
    x_pad = jnp.pad(x, ((0, 0), (pad_left, pad_right)))

    # Wide-chunk frames (B, l_pad, kw): row l = x_pad[:, l*hop : l*hop + kw].
    # Built from r shifted hop-strided views concatenated on the lane axis (XLA side).
    frames = jnp.concatenate(
        [x_pad[:, j * hop:(j + l_pad) * hop].reshape(B, l_pad, hop) for j in range(r)],
        axis=-1)

    kernel = functools.partial(_stft_mag_kernel, cpad=cpad)

    out = pl.pallas_call(
        kernel,
        out_shape=jax.ShapeDtypeStruct((B, cpad, l_pad), jnp.float32),
        grid_spec=pltpu.PrefetchScalarGridSpec(
            num_scalar_prefetch=0,
            grid=(B, n_tiles),
            in_specs=[
                # one wide frame tile per step
                pl.BlockSpec((1, tm, kw), lambda b, i: (b, i, 0)),
                # fused basis, resident (constant index map)
                pl.BlockSpec((kw, 2 * cpad), lambda b, i: (0, 0)),
            ],
            # transposed output tile: (B, cpad, l_pad) sliced along frames
            out_specs=pl.BlockSpec((1, cpad, tm), lambda b, i: (b, 0, i)),
        ),
        compiler_params=pltpu.CompilerParams(
            dimension_semantics=("parallel", "parallel"),
            vmem_limit_bytes=32 * 1024 * 1024,
        ),
        cost_estimate=pl.CostEstimate(
            flops=2 * B * l_pad * kw * (2 * cpad),
            transcendentals=B * l_pad * cpad,
            bytes_accessed=4 * (B * l_pad * kw + kw * 2 * cpad + B * cpad * l_pad),
        ),
    )(frames, basis)

    # Kernel already emitted the (B, freq, frame) layout; only a cheap slice remains.
    return out[:, :cutoff, :L]


def _stft_magnitude_ref(x, filter_length, hop_length):
    """Plain-JAX reference following the F.conv1d + magnitude math exactly."""
    if x.ndim == 1:
        x = x[None, :]
    B, T = x.shape
    K, hop = filter_length, hop_length
    cutoff = K // 2 + 1
    fourier = np.fft.fft(np.eye(K))
    fb = np.vstack([np.real(fourier[:cutoff, :]),
                    np.imag(fourier[:cutoff, :])]).astype(np.float32)
    L = (T + K) // hop + 1
    x_pad = jnp.pad(x.astype(jnp.float32), ((0, 0), (K, K)))
    idx = (jnp.arange(L) * hop)[:, None] + jnp.arange(K)[None, :]
    frames = x_pad[:, idx]                                           # (B, L, K)
    real = jnp.einsum("blk,ck->bcl", frames, jnp.asarray(fb[:cutoff]),
                      precision=jax.lax.Precision.HIGHEST)
    imag = jnp.einsum("blk,ck->bcl", frames, jnp.asarray(fb[cutoff:]),
                      precision=jax.lax.Precision.HIGHEST)
    return jnp.sqrt(real ** 2 + imag ** 2)


if __name__ == "__main__":
    key = jax.random.PRNGKey(0)
    configs = [
        # (filter_length, hop_length, batch, num_samples) -- small shapes
        (128, 32, 2, 512),      # small smoke test (cutoff=65 -> Cpad=128, K-depth 128)
        (480, 160, 2, 2048),    # module default filter/hop on a short signal (Cpad=256)
    ]
    for cfg_i, (K, hop, B, T) in enumerate(configs):
        k = jax.random.fold_in(key, cfg_i)
        x = jax.random.normal(k, (B, T), dtype=jnp.float32)

        mag = jax.block_until_ready(stft_magnitude(x, K, hop))
        ref = jax.block_until_ready(_stft_magnitude_ref(x, K, hop))

        cutoff = K // 2 + 1
        L = (T + K) // hop + 1
        assert mag.shape == (B, cutoff, L), (mag.shape, (B, cutoff, L))
        np.testing.assert_allclose(np.asarray(mag), np.asarray(ref),
                                   rtol=1e-4, atol=1e-3)
    print("KERNEL_OK")
</pallas_src>

<mosaic_0001>
module attributes {stable_mosaic.version = 11 : i64} {
  func.func @_stft_mag_kernel(%arg0: i32, %arg1: i32, %arg2: memref<1x128x128xf32, #tpu.memory_space<vmem>>, %arg3: memref<128x256xf32, #tpu.memory_space<vmem>>, %arg4: memref<1x128x128xf32, #tpu.memory_space<vmem>>) attributes {dimension_semantics = [#tpu.dimension_semantics<parallel>, #tpu.dimension_semantics<parallel>], iteration_bounds = array<i64: 2, 1>, scalar_prefetch = 0 : i64, scratch_operands = 0 : i64, tpu.core_type = #tpu.core_type<tc>, window_params = [{transform_indices = @transform_0, window_bounds = array<i64: 1, 128, 128>}, {pipeline_mode = #tpu.pipeline_mode<synchronous>, transform_indices = @transform_1, window_bounds = array<i64: 128, 256>}, {transform_indices = @transform_2, window_bounds = array<i64: 1, 128, 128>}]} {
    %c0 = arith.constant 0 : index
    %c0_0 = arith.constant 0 : index
    %c0_1 = arith.constant 0 : index
    %0 = vector.load %arg2[%c0, %c0_0, %c0_1] : memref<1x128x128xf32, #tpu.memory_space<vmem>>, vector<1x128x128xf32>
    %1 = vector.shape_cast %0 : vector<1x128x128xf32> to vector<128x128xf32>
    %c0_2 = arith.constant 0 : index
    %c0_3 = arith.constant 0 : index
    %2 = vector.load %arg3[%c0_2, %c0_3] : memref<128x256xf32, #tpu.memory_space<vmem>>, vector<128x256xf32>
    %cst = arith.constant dense<0.000000e+00> : vector<128x256xf32>
    %3 = tpu.matmul %1, %2, %cst {dimension_numbers = #tpu.dot_dimension_numbers<[1], [0], [0], [1], [0, 0, 1, 1], [], []>} : vector<128x128xf32>, vector<128x256xf32>, vector<128x256xf32> -> vector<128x256xf32>
    %4 = vector.extract_strided_slice %3 {offsets = [0, 0], sizes = [128, 128], strides = [1, 1]} : vector<128x256xf32> to vector<128x128xf32>
    %5 = vector.extract_strided_slice %3 {offsets = [0, 128], sizes = [128, 128], strides = [1, 1]} : vector<128x256xf32> to vector<128x128xf32>
    %6 = arith.mulf %4, %4 : vector<128x128xf32>
    %7 = arith.mulf %5, %5 : vector<128x128xf32>
    %8 = arith.addf %6, %7 : vector<128x128xf32>
    %9 = math.sqrt %8 : vector<128x128xf32>
    %10 = tpu.transpose %9, [1, 0] : vector<128x128xf32> -> vector<128x128xf32>
    %c0_4 = arith.constant 0 : index
    %c0_5 = arith.constant 0 : index
    %c0_6 = arith.constant 0 : index
    %11 = vector.load %arg4[%c0_4, %c0_5, %c0_6] : memref<1x128x128xf32, #tpu.memory_space<vmem>>, vector<1x128x128xf32>
    %12 = vector.shape_cast %11 : vector<1x128x128xf32> to vector<128x128xf32>
    %13 = vector.shape_cast %10 : vector<128x128xf32> to vector<1x128x128xf32>
    tpu.vector_store %arg4[%c0_4, %c0_5, %c0_6], %13 {strides = array<i32>} : memref<1x128x128xf32, #tpu.memory_space<vmem>>, vector<1x128x128xf32>,
    return
  }
  func.func @transform_0(%arg0: i32, %arg1: i32) -> (i32, i32, i32) {
    %c0_i32 = arith.constant 0 : i32
    %c0_i32_0 = arith.constant 0 : i32
    return %arg0, %arg1, %c0_i32 : i32, i32, i32
  }
  func.func @transform_1(%arg0: i32, %arg1: i32) -> (i32, i32) {
    %c0_i32 = arith.constant 0 : i32
    %c0_i32_0 = arith.constant 0 : i32
    %c0_i32_1 = arith.constant 0 : i32
    return %c0_i32, %c0_i32_0 : i32, i32
  }
  func.func @transform_2(%arg0: i32, %arg1: i32) -> (i32, i32, i32) {
    %c0_i32 = arith.constant 0 : i32
    %c0_i32_0 = arith.constant 0 : i32
    return %arg0, %c0_i32, %arg1 : i32, i32, i32
  }
}

</mosaic_0001>

<llo_original>
// kernel: tpu_custom_call.1
$region0: #{tpu_custom_call.1}
  #allocation0 [shape = 'u32[]', space=smem, size = 0x4, offset = 0x4, fixed_abs, tag = 'smem constant byte address 0x4 - core index']
  #allocation1 [shape = 'u32[72,128]{1,0:T(1,128)}', space=vmem, size = 0x9000, scoped, tag = 'internal scratch']
  %s0 = inlined_call_operand.hbm [shape: f32[2,128,128], index: 0, kind: input, shape index: {}]
  %s1 = inlined_call_operand.hbm [shape: f32[128,256], index: 1, kind: input, shape index: {}]
  %s2 = inlined_call_operand.hbm [shape: f32[2,128,128], index: 2, kind: output, shape index: {}]
  %s3 = sld [smem:[#allocation0]]
  $region49: #{tpu_custom_call.1} parent=0
    _
  %s5 = ssub.s32 1, %s3
  %s6 = scalar_select 0, %s5, %s3
  $region1: #{tpu_custom_call.1} parent=0
    #allocation2 [shape = 'u8[131072]{0}', space=vmem, size = 0x20000, scoped, tag = 'input window, operand 0']
    #allocation3 [shape = 's32[2]{0}', space=sflag, size = 0x8, scoped, tag = 'scoped memory for tpu_custom_call.1']
    #allocation4 [shape = 's32[2]{0}', space=sflag, size = 0x8, scoped, tag = 'scoped memory for tpu_custom_call.1']
    #allocation5 [shape = 'u8[131072]{0}', space=vmem, size = 0x20000, scoped, tag = 'input window, operand 1, single buffered']
    #allocation6 [shape = 's32[1]{0}', space=sflag, size = 0x4, scoped, tag = 'scoped memory for tpu_custom_call.1']
    #allocation7 [shape = 'u8[131072]{0}', space=vmem, size = 0x20000, scoped, tag = 'output window, operand 0']
    %7 = vsyncpa [#allocation3], 0
    %s8 = scalar_lea.sflag [#allocation3], 1
    %9 = vsyncpa %s8, 0
    %10 = vsyncpa [#allocation6], 0
    %11 = vsyncpa [#allocation4], 0
    %s12 = scalar_lea.sflag [#allocation4], 1
    %13 = vsyncpa %s12, 0
    loop: start=0, step=1, limit=4
    $region2: #{tpu_custom_call.1} parent=1 // loop_pre_header
      _
    $region3: #{tpu_custom_call.1} parent=1 // loop_header
      %s15 = sphi 0, %s19
      %p16 = scmp.ge.s32.totalorder %s15, 4
      %s22 = sphi 0, %s34
      %s23 = sphi 0, %s30
      %s24 = sphi 0, %s22
      %s25 = sphi 0, %s23
      %s26 = sphi 0, %s24
      %s27 = sphi 0, %s25
      %s39 = sphi 0, %s41
      %s42 = sphi 0, %s39
      %s43 = sphi 0, %s42
      %s59 = sphi 0, %s43
      %s63 = sphi 0, %s63
      %s65 = sphi 0, %s63
      %s66 = sphi 0, %s65
      %s80 = sphi 0, %s66
      %s88 = sphi 0, %s90
      %s91 = sphi 0, %s88
      %s92 = sphi 0, %s91
      %s108 = sphi 0, %s92
    $region4: #{tpu_custom_call.1} parent=1 // loop_header_branch
      %18 = sbr.rel (%p16) target = $region8
    $region5: #{tpu_custom_call.1} parent=1 // loop_body
      %s20 = ssub.s32 %s15, 1
      %s21 = ssub.s32 %s15, 2
      %s28 = sadd.s32 1, %s23
      %p29 = scmp.ge.s32.totalorder %s28, 1
      %s30 = scalar_select %p29, 0, %s28
      %s31 = sadd.s32 1, %s22
      %s32 = scalar_select %p29, %s31, %s22
      %p33 = scmp.ge.s32.totalorder %s32, 2
      %s34 = scalar_select %p33, 0, %s32
      %s35 = ssub.s32 %s22, %s34
      %s36 = ssub.s32 %s23, %s30
      %s37 = sor.u32 %s35, %s36
      %p38 = scmp.eq.s32.totalorder %s37, 0
      %s40 = sadd.s32 %s39, 1
      %s41 = scalar_select %p38, %s39, %s40
      %p44 = pneg %p38
      %p45 = scmp.eq.s32.totalorder %s15, 1
      %p46 = por %p44, %p45
      %p47 = scmp.ne.s32.totalorder %s39, %s42
      %p48 = scmp.eq.s32.totalorder %s15, 0
      %p49 = por %p47, %p48
      %p50 = scmp.ne.s32.totalorder %s39, %s42
      %p51 = scmp.eq.s32.totalorder %s20, 1
      %p52 = por %p50, %p51
      %p53 = scmp.ne.s32.totalorder %s42, %s43
      %p54 = scmp.eq.s32.totalorder %s20, 0
      %p55 = por %p53, %p54
      %p56 = scmp.ne.s32.totalorder %s42, %s43
      %p57 = scmp.eq.s32.totalorder %s21, 1
      %p58 = por %p56, %p57
      %p60 = scmp.ne.s32.totalorder %s43, %s59
      %p61 = scmp.eq.s32.totalorder %s21, 0
      %p62 = por %p60, %p61
      %s64 = sadd.s32 %s63, 1
      %p67 = scmp.eq.s32.totalorder %s15, 1
      %p68 = scmp.ne.s32.totalorder %s63, %s65
      %p69 = scmp.eq.s32.totalorder %s15, 0
      %p70 = por %p68, %p69
      %p71 = scmp.ne.s32.totalorder %s63, %s65
      %p72 = scmp.eq.s32.totalorder %s20, 1
      %p73 = por %p71, %p72
      %p74 = scmp.ne.s32.totalorder %s65, %s66
      %p75 = scmp.eq.s32.totalorder %s20, 0
      %p76 = por %p74, %p75
      %p77 = scmp.ne.s32.totalorder %s65, %s66
      %p78 = scmp.eq.s32.totalorder %s21, 1
      %p79 = por %p77, %p78
      %p81 = scmp.ne.s32.totalorder %s66, %s80
      %p82 = scmp.eq.s32.totalorder %s21, 0
      %p83 = por %p81, %p82
      %s84 = ssub.s32 %s22, %s34
      %s85 = ssub.s32 %s23, %s30
      %s86 = sor.u32 %s84, %s85
      %p87 = scmp.eq.s32.totalorder %s86, 0
      %s89 = sadd.s32 %s88, 1
      %s90 = scalar_select %p87, %s88, %s89
      %p93 = pneg %p87
      %p94 = scmp.eq.s32.totalorder %s15, 1
      %p95 = por %p93, %p94
      %p96 = scmp.ne.s32.totalorder %s88, %s91
      %p97 = scmp.eq.s32.totalorder %s15, 0
      %p98 = por %p96, %p97
      %p99 = scmp.ne.s32.totalorder %s88, %s91
      %p100 = scmp.eq.s32.totalorder %s20, 1
      %p101 = por %p99, %p100
      %p102 = scmp.ne.s32.totalorder %s91, %s92
      %p103 = scmp.eq.s32.totalorder %s20, 0
      %p104 = por %p102, %p103
      %p105 = scmp.ne.s32.totalorder %s91, %s92
      %p106 = scmp.eq.s32.totalorder %s21, 1
      %p107 = por %p105, %p106
      %p109 = scmp.ne.s32.totalorder %s92, %s108
      %p110 = scmp.eq.s32.totalorder %s21, 0
      %p111 = por %p109, %p110
      %p112 = scmp.le.s32.totalorder 1, %s15
      %p113 = scmp.lt.s32.totalorder %s15, 3
      %p114 = pnand %p112, %p113
      %p115 = pneg %p114
      // Predicated region
      $region9: #{tpu_custom_call.1} parent=5 // pred_check
        _
      $region10: #{tpu_custom_call.1} parent=5 // pred_check_branch
        %117 = sbr.rel (%p114) target = $region12
      $region11: #{tpu_custom_call.1} parent=5 // pred_region
        %s118 = ssub.s32 %s15, 1
        // Predicated region
        $region13: #{tpu_custom_call.1} parent=11 // pred_check
          %p119 = pneg %p76
        $region14: #{tpu_custom_call.1} parent=11 // pred_check_branch
          %121 = sbr.rel (%p119) target = $region16
        $region15: #{tpu_custom_call.1} parent=11 // pred_region
          %123 = vsyncadd [#allocation6], 0
          %s124 = sshll.u32 %s1, 4
          %s125 = int_to_ptr.hbm [resolvable:$true] %s124
          %s126 = sshll.u32 [#allocation5], 4
          %s127 = int_to_ptr.vmem [resolvable:$true] %s126
          %132 = dma.hbm_to_vmem [thread:$0]  %s125, 4096, %s127, [#allocation6], 256, 256, 16
        $region16: #{tpu_custom_call.1} parent=11 // pred_fallthru
          _
      $region12: #{tpu_custom_call.1} parent=5 // pred_fallthru
        _
      %p133 = scmp.lt.s32.totalorder %s15, 2
      // Predicated region
      $region17: #{tpu_custom_call.1} parent=5 // pred_check
        %p134 = pneg %p133
      $region18: #{tpu_custom_call.1} parent=5 // pred_check_branch
        %136 = sbr.rel (%p134) target = $region20
      $region19: #{tpu_custom_call.1} parent=5 // pred_region
        // Predicated region
        $region21: #{tpu_custom_call.1} parent=19 // pred_check
          %p137 = pneg %p49
        $region22: #{tpu_custom_call.1} parent=19 // pred_check_branch
          %139 = sbr.rel (%p137) target = $region24
        $region23: #{tpu_custom_call.1} parent=19 // pred_region
          %s140 = sand.u32 %s39, 1
          %s141 = scalar_lea.sflag [#allocation3], %s140
          %s142 = sand.u32 %s39, 1
          %s143 = smul.addr %s142, 128
          %s144 = scalar_lea.vmem [#allocation2], %s143
          %s145 = smul.u32 16, %s23
          %147 = vsyncadd %s141, 0
          %s148 = smul.addr %s22, 16
          %s149 = sadd.s32 %s145, %s148
          %s150 = smul.addr %s149, 8
          %s151 = scalar_lea.hbm %s0, %s150
          %s152 = sshll.u32 %s151, 4
          %s153 = int_to_ptr.hbm [resolvable:$true] %s152
          %s154 = sshll.u32 %s144, 4
          %s155 = int_to_ptr.vmem [resolvable:$true] %s154
          %160 = dma.hbm_to_vmem [thread:$0]  %s153, 2048, %s155, %s141, 128, 128, 8
        $region24: #{tpu_custom_call.1} parent=19 // pred_fallthru
          _
      $region20: #{tpu_custom_call.1} parent=5 // pred_fallthru
        _
      %p161 = scmp.le.s32.totalorder 1, %s15
      %p162 = scmp.lt.s32.totalorder %s15, 3
      %p163 = pnand %p161, %p162
      %p164 = pneg %p163
      // Predicated region
      $region25: #{tpu_custom_call.1} parent=5 // pred_check
        _
      $region26: #{tpu_custom_call.1} parent=5 // pred_check_branch
        %166 = sbr.rel (%p163) target = $region28
      $region27: #{tpu_custom_call.1} parent=5 // pred_region
        %s167 = ssub.s32 %s15, 1
        %s168 = sand.u32 %s42, 1
        %s169 = scalar_lea.sflag [#allocation3], %s168
        %s170 = sand.u32 %s42, 1
        %s171 = smul.addr %s170, 128
        %s172 = scalar_lea.vmem [#allocation2], %s171
        // Predicated region
        $region29: #{tpu_custom_call.1} parent=27 // pred_check
          %p173 = pneg %p55
        $region30: #{tpu_custom_call.1} parent=27 // pred_check_branch
          %175 = sbr.rel (%p173) target = $region32
        $region31: #{tpu_custom_call.1} parent=27 // pred_region
          %177 = dma.done %s169, 2048
        $region32: #{tpu_custom_call.1} parent=27 // pred_fallthru
          _
        // Predicated region
        $region33: #{tpu_custom_call.1} parent=27 // pred_check
          %p178 = pneg %p76
        $region34: #{tpu_custom_call.1} parent=27 // pred_check_branch
          %180 = sbr.rel (%p178) target = $region36
        $region35: #{tpu_custom_call.1} parent=27 // pred_region
          %182 = dma.done [#allocation6], 4096
        $region36: #{tpu_custom_call.1} parent=27 // pred_fallthru
          _
        %s183 = sand.u32 %s42, 1
        %s184 = scalar_lea.sflag [#allocation3], %s183
        %s185 = sand.u32 %s42, 1
        %s186 = smul.addr %s185, 128
        %s187 = scalar_lea.vmem [#allocation2], %s186
        %p188 = pneg %p55
        %p189 = pneg %p52
        %p190 = pneg %p76
        %p191 = pneg %p73
        %p192 = pneg %p104
        %p193 = pneg %p101
        %s194 = sand.u32 %s91, 1
        %s195 = scalar_lea.sflag [#allocation4], %s194
        %s196 = sand.u32 %s91, 1
        %s197 = smul.addr %s196, 128
        %s198 = scalar_lea.vmem [#allocation7], %s197
        %s199 = smul.u32 16, %s25
        %v200 = vld [vmem:[%s172] sm:$0xff]
        %v201 = vld [vmem:[%s172 + $0x8] sm:$0xff]
        %v202 = vld [vmem:[%s172 + $0x10] sm:$0xff]
        %v203 = vld [vmem:[%s172 + $0x18] sm:$0xff]
        %v204 = vld [vmem:[%s172 + $0x20] sm:$0xff]
        %v205 = vld [vmem:[%s172 + $0x28] sm:$0xff]
        %v206 = vld [vmem:[%s172 + $0x30] sm:$0xff]
        %v207 = vld [vmem:[%s172 + $0x38] sm:$0xff]
        %v208 = vld [vmem:[%s172 + $0x40] sm:$0xff]
        %v209 = vld [vmem:[%s172 + $0x48] sm:$0xff]
        %v210 = vld [vmem:[%s172 + $0x50] sm:$0xff]
        %v211 = vld [vmem:[%s172 + $0x58] sm:$0xff]
        %v212 = vld [vmem:[%s172 + $0x60] sm:$0xff]
        %v213 = vld [vmem:[%s172 + $0x68] sm:$0xff]
        %v214 = vld [vmem:[%s172 + $0x70] sm:$0xff]
        %v215 = vld [vmem:[%s172 + $0x78] sm:$0xff]
        %v216 = vld [vmem:[#allocation5] sm:$0xff]
        %v217 = vld [vmem:[#allocation5 + $0x8] sm:$0xff]
        %v218 = vld [vmem:[#allocation5 + $0x10] sm:$0xff]
        %v219 = vld [vmem:[#allocation5 + $0x18] sm:$0xff]
        %v220 = vld [vmem:[#allocation5 + $0x20] sm:$0xff]
        %v221 = vld [vmem:[#allocation5 + $0x28] sm:$0xff]
        %v222 = vld [vmem:[#allocation5 + $0x30] sm:$0xff]
        %v223 = vld [vmem:[#allocation5 + $0x38] sm:$0xff]
        %v224 = vld [vmem:[#allocation5 + $0x40] sm:$0xff]
        %v225 = vld [vmem:[#allocation5 + $0x48] sm:$0xff]
        %v226 = vld [vmem:[#allocation5 + $0x50] sm:$0xff]
        %v227 = vld [vmem:[#allocation5 + $0x58] sm:$0xff]
        %v228 = vld [vmem:[#allocation5 + $0x60] sm:$0xff]
        %v229 = vld [vmem:[#allocation5 + $0x68] sm:$0xff]
        %v230 = vld [vmem:[#allocation5 + $0x70] sm:$0xff]
        %v231 = vld [vmem:[#allocation5 + $0x78] sm:$0xff]
        %v232 = vld [vmem:[#allocation5 + $0x80] sm:$0xff]
        %v233 = vld [vmem:[#allocation5 + $0x88] sm:$0xff]
        %v234 = vld [vmem:[#allocation5 + $0x90] sm:$0xff]
        %v235 = vld [vmem:[#allocation5 + $0x98] sm:$0xff]
        %v236 = vld [vmem:[#allocation5 + $0xa0] sm:$0xff]
        %v237 = vld [vmem:[#allocation5 + $0xa8] sm:$0xff]
        %v238 = vld [vmem:[#allocation5 + $0xb0] sm:$0xff]
        %v239 = vld [vmem:[#allocation5 + $0xb8] sm:$0xff]
        %v240 = vld [vmem:[#allocation5 + $0xc0] sm:$0xff]
        %v241 = vld [vmem:[#allocation5 + $0xc8] sm:$0xff]
        %v242 = vld [vmem:[#allocation5 + $0xd0] sm:$0xff]
        %v243 = vld [vmem:[#allocation5 + $0xd8] sm:$0xff]
        %v244 = vld [vmem:[#allocation5 + $0xe0] sm:$0xff]
        %v245 = vld [vmem:[#allocation5 + $0xe8] sm:$0xff]
        %v246 = vld [vmem:[#allocation5 + $0xf0] sm:$0xff]
        %v247 = vld [vmem:[#allocation5 + $0xf8] sm:$0xff]
        %248 = vmatpush.msra.mxu0 %v246
        %249 = vmatpush.msra.mxu0 %v244
        %250 = vmatpush.msra.mxu0 %v242
        %251 = vmatpush.msra.mxu0 %v240
        %252 = vmatpush.msra.mxu0 %v238
        %253 = vmatpush.msra.mxu0 %v236
        %254 = vmatpush.msra.mxu0 %v234
        %255 = vmatpush.msra.mxu0 %v232
        %256 = vmatpush.msra.mxu0 %v230
        %257 = vmatpush.msra.mxu0 %v228
        %258 = vmatpush.msra.mxu0 %v226
        %259 = vmatpush.msra.mxu0 %v224
        %260 = vmatpush.msra.mxu0 %v222
        %261 = vmatpush.msra.mxu0 %v220
        %262 = vmatpush.msra.mxu0 %v218
        %263 = vmatpush.msra.mxu0 %v216
        %264 = vmatmul.f32.gmra.mxu0 %v200
        %v265 = vpop.f32.mrf.mxu0
        %v266 = vadd.f32 0.0, %v265
        %267 = vmatmul.f32.gmra.mxu0 %v201
        %v268 = vpop.f32.mrf.mxu0
        %v269 = vadd.f32 0.0, %v268
        %270 = vmatmul.f32.gmra.mxu0 %v202
        %v271 = vpop.f32.mrf.mxu0
        %v272 = vadd.f32 0.0, %v271
        %273 = vmatmul.f32.gmra.mxu0 %v203
        %v274 = vpop.f32.mrf.mxu0
        %v275 = vadd.f32 0.0, %v274
        %276 = vmatmul.f32.gmra.mxu0 %v204
        %v277 = vpop.f32.mrf.mxu0
        %v278 = vadd.f32 0.0, %v277
        %279 = vmatmul.f32.gmra.mxu0 %v205
        %v280 = vpop.f32.mrf.mxu0
        %v281 = vadd.f32 0.0, %v280
        %282 = vmatmul.f32.gmra.mxu0 %v206
        %v283 = vpop.f32.mrf.mxu0
        %v284 = vadd.f32 0.0, %v283
        %285 = vmatmul.f32.gmra.mxu0 %v207
        %v286 = vpop.f32.mrf.mxu0
        %v287 = vadd.f32 0.0, %v286
        %288 = vmatmul.f32.gmra.mxu0 %v208
        %v289 = vpop.f32.mrf.mxu0
        %v290 = vadd.f32 0.0, %v289
        %291 = vmatmul.f32.gmra.mxu0 %v209
        %v292 = vpop.f32.mrf.mxu0
        %v293 = vadd.f32 0.0, %v292
        %294 = vmatmul.f32.gmra.mxu0 %v210
        %v295 = vpop.f32.mrf.mxu0
        %v296 = vadd.f32 0.0, %v295
        %297 = vmatmul.f32.gmra.mxu0 %v211
        %v298 = vpop.f32.mrf.mxu0
        %v299 = vadd.f32 0.0, %v298
        %300 = vmatmul.f32.gmra.mxu0 %v212
        %v301 = vpop.f32.mrf.mxu0
        %v302 = vadd.f32 0.0, %v301
        %303 = vmatmul.f32.gmra.mxu0 %v213
        %v304 = vpop.f32.mrf.mxu0
        %v305 = vadd.f32 0.0, %v304
        %306 = vmatmul.f32.gmra.mxu0 %v214
        %v307 = vpop.f32.mrf.mxu0
        %v308 = vadd.f32 0.0, %v307
        %309 = vmatmul.f32.gmra.mxu0 %v215
        %v310 = vpop.f32.mrf.mxu0
        %v311 = vadd.f32 0.0, %v310
        %312 = vdwg.mxu0
        %313 = vmatpush.msra.mxu0 %v247
        %314 = vmatpush.msra.mxu0 %v245
        %315 = vmatpush.msra.mxu0 %v243
        %316 = vmatpush.msra.mxu0 %v241
        %317 = vmatpush.msra.mxu0 %v239
        %318 = vmatpush.msra.mxu0 %v237
        %319 = vmatpush.msra.mxu0 %v235
        %320 = vmatpush.msra.mxu0 %v233
        %321 = vmatpush.msra.mxu0 %v231
        %322 = vmatpush.msra.mxu0 %v229
        %323 = vmatpush.msra.mxu0 %v227
        %324 = vmatpush.msra.mxu0 %v225
        %325 = vmatpush.msra.mxu0 %v223
        %326 = vmatpush.msra.mxu0 %v221
        %327 = vmatpush.msra.mxu0 %v219
        %328 = vmatpush.msra.mxu0 %v217
        %329 = vmatmul.f32.gmra.mxu0 %v200
        %v330 = vpop.f32.mrf.mxu0
        %v331 = vadd.f32 0.0, %v330
        %332 = vmatmul.f32.gmra.mxu0 %v201
        %v333 = vpop.f32.mrf.mxu0
        %v334 = vadd.f32 0.0, %v333
        %335 = vmatmul.f32.gmra.mxu0 %v202
        %v336 = vpop.f32.mrf.mxu0
        %v337 = vadd.f32 0.0, %v336
        %338 = vmatmul.f32.gmra.mxu0 %v203
        %v339 = vpop.f32.mrf.mxu0
        %v340 = vadd.f32 0.0, %v339
        %341 = vmatmul.f32.gmra.mxu0 %v204
        %v342 = vpop.f32.mrf.mxu0
        %v343 = vadd.f32 0.0, %v342
        %344 = vmatmul.f32.gmra.mxu0 %v205
        %v345 = vpop.f32.mrf.mxu0
        %v346 = vadd.f32 0.0, %v345
        %347 = vmatmul.f32.gmra.mxu0 %v206
        %v348 = vpop.f32.mrf.mxu0
        %v349 = vadd.f32 0.0, %v348
        %350 = vmatmul.f32.gmra.mxu0 %v207
        %v351 = vpop.f32.mrf.mxu0
        %v352 = vadd.f32 0.0, %v351
        %353 = vmatmul.f32.gmra.mxu0 %v208
        %v354 = vpop.f32.mrf.mxu0
        %v355 = vadd.f32 0.0, %v354
        %356 = vmatmul.f32.gmra.mxu0 %v209
        %v357 = vpop.f32.mrf.mxu0
        %v358 = vadd.f32 0.0, %v357
        %359 = vmatmul.f32.gmra.mxu0 %v210
        %v360 = vpop.f32.mrf.mxu0
        %v361 = vadd.f32 0.0, %v360
        %362 = vmatmul.f32.gmra.mxu0 %v211
        %v363 = vpop.f32.mrf.mxu0
        %v364 = vadd.f32 0.0, %v363
        %365 = vmatmul.f32.gmra.mxu0 %v212
        %v366 = vpop.f32.mrf.mxu0
        %v367 = vadd.f32 0.0, %v366
        %368 = vmatmul.f32.gmra.mxu0 %v213
        %v369 = vpop.f32.mrf.mxu0
        %v370 = vadd.f32 0.0, %v369
        %371 = vmatmul.f32.gmra.mxu0 %v214
        %v372 = vpop.f32.mrf.mxu0
        %v373 = vadd.f32 0.0, %v372
        %374 = vmatmul.f32.gmra.mxu0 %v215
        %v375 = vpop.f32.mrf.mxu0
        %v376 = vadd.f32 0.0, %v375
        %377 = vdwg.mxu0
        %v378 = vmul.f32 %v266, %v266
        %v379 = vmul.f32 %v269, %v269
        %v380 = vmul.f32 %v272, %v272
        %v381 = vmul.f32 %v275, %v275
        %v382 = vmul.f32 %v278, %v278
        %v383 = vmul.f32 %v281, %v281
        %v384 = vmul.f32 %v284, %v284
        %v385 = vmul.f32 %v287, %v287
        %v386 = vmul.f32 %v290, %v290
        %v387 = vmul.f32 %v293, %v293
        %v388 = vmul.f32 %v296, %v296
        %v389 = vmul.f32 %v299, %v299
        %v390 = vmul.f32 %v302, %v302
        %v391 = vmul.f32 %v305, %v305
        %v392 = vmul.f32 %v308, %v308
        %v393 = vmul.f32 %v311, %v311
        %v394 = vmul.f32 %v331, %v331
        %v395 = vmul.f32 %v334, %v334
        %v396 = vmul.f32 %v337, %v337
        %v397 = vmul.f32 %v340, %v340
        %v398 = vmul.f32 %v343, %v343
        %v399 = vmul.f32 %v346, %v346
        %v400 = vmul.f32 %v349, %v349
        %v401 = vmul.f32 %v352, %v352
        %v402 = vmul.f32 %v355, %v355
        %v403 = vmul.f32 %v358, %v358
        %v404 = vmul.f32 %v361, %v361
        %v405 = vmul.f32 %v364, %v364
        %v406 = vmul.f32 %v367, %v367
        %v407 = vmul.f32 %v370, %v370
        %v408 = vmul.f32 %v373, %v373
        %v409 = vmul.f32 %v376, %v376
        %v410 = vadd.f32 %v378, %v394
        %v411 = vadd.f32 %v379, %v395
        %v412 = vadd.f32 %v380, %v396
        %v413 = vadd.f32 %v381, %v397
        %v414 = vadd.f32 %v382, %v398
        %v415 = vadd.f32 %v383, %v399
        %v416 = vadd.f32 %v384, %v400
        %v417 = vadd.f32 %v385, %v401
        %v418 = vadd.f32 %v386, %v402
        %v419 = vadd.f32 %v387, %v403
        %v420 = vadd.f32 %v388, %v404
        %v421 = vadd.f32 %v389, %v405
        %v422 = vadd.f32 %v390, %v406
        %v423 = vadd.f32 %v391, %v407
        %v424 = vadd.f32 %v392, %v408
        %v425 = vadd.f32 %v393, %v409
        %v426 = vrsqrt.pop %v410
        %v427 = vmul.f32 %v426, %v410
        %v428 = vmul.f32 %v427, %v426
        %v429 = vmul.f32 0.5, %v428
        %v430 = vsub.f32 1.5, %v429
        %v431 = vmul.f32 %v426, %v430
        %v432 = vmul.f32 %v410, %v431
        %vm433 = vcmp.eq.f32.partialorder %v410, inf
        %v434 = vsel %vm433, %v410, %v432
        %vm435 = vcmp.eq.f32.partialorder %v410, 0.0
        %v436 = vand.u32 %v410, 2147483648
        %v437 = vsel %vm435, %v436, %v434
        %v438 = vrsqrt.pop %v411
        %v439 = vmul.f32 %v438, %v411
        %v440 = vmul.f32 %v439, %v438
        %v441 = vmul.f32 0.5, %v440
        %v442 = vsub.f32 1.5, %v441
        %v443 = vmul.f32 %v438, %v442
        %v444 = vmul.f32 %v411, %v443
        %vm445 = vcmp.eq.f32.partialorder %v411, inf
        %v446 = vsel %vm445, %v411, %v444
        %vm447 = vcmp.eq.f32.partialorder %v411, 0.0
        %v448 = vand.u32 %v411, 2147483648
        %v449 = vsel %vm447, %v448, %v446
        %v450 = vrsqrt.pop %v412
        %v451 = vmul.f32 %v450, %v412
        %v452 = vmul.f32 %v451, %v450
        %v453 = vmul.f32 0.5, %v452
        %v454 = vsub.f32 1.5, %v453
        %v455 = vmul.f32 %v450, %v454
        %v456 = vmul.f32 %v412, %v455
        %vm457 = vcmp.eq.f32.partialorder %v412, inf
        %v458 = vsel %vm457, %v412, %v456
        %vm459 = vcmp.eq.f32.partialorder %v412, 0.0
        %v460 = vand.u32 %v412, 2147483648
        %v461 = vsel %vm459, %v460, %v458
        %v462 = vrsqrt.pop %v413
        %v463 = vmul.f32 %v462, %v413
        %v464 = vmul.f32 %v463, %v462
        %v465 = vmul.f32 0.5, %v464
        %v466 = vsub.f32 1.5, %v465
        %v467 = vmul.f32 %v462, %v466
        %v468 = vmul.f32 %v413, %v467
        %vm469 = vcmp.eq.f32.partialorder %v413, inf
        %v470 = vsel %vm469, %v413, %v468
        %vm471 = vcmp.eq.f32.partialorder %v413, 0.0
        %v472 = vand.u32 %v413, 2147483648
        %v473 = vsel %vm471, %v472, %v470
        %v474 = vrsqrt.pop %v414
        %v475 = vmul.f32 %v474, %v414
        %v476 = vmul.f32 %v475, %v474
        %v477 = vmul.f32 0.5, %v476
        %v478 = vsub.f32 1.5, %v477
        %v479 = vmul.f32 %v474, %v478
        %v480 = vmul.f32 %v414, %v479
        %vm481 = vcmp.eq.f32.partialorder %v414, inf
        %v482 = vsel %vm481, %v414, %v480
        %vm483 = vcmp.eq.f32.partialorder %v414, 0.0
        %v484 = vand.u32 %v414, 2147483648
        %v485 = vsel %vm483, %v484, %v482
        %v486 = vrsqrt.pop %v415
        %v487 = vmul.f32 %v486, %v415
        %v488 = vmul.f32 %v487, %v486
        %v489 = vmul.f32 0.5, %v488
        %v490 = vsub.f32 1.5, %v489
        %v491 = vmul.f32 %v486, %v490
        %v492 = vmul.f32 %v415, %v491
        %vm493 = vcmp.eq.f32.partialorder %v415, inf
        %v494 = vsel %vm493, %v415, %v492
        %vm495 = vcmp.eq.f32.partialorder %v415, 0.0
        %v496 = vand.u32 %v415, 2147483648
        %v497 = vsel %vm495, %v496, %v494
        %v498 = vrsqrt.pop %v416
        %v499 = vmul.f32 %v498, %v416
        %v500 = vmul.f32 %v499, %v498
        %v501 = vmul.f32 0.5, %v500
        %v502 = vsub.f32 1.5, %v501
        %v503 = vmul.f32 %v498, %v502
        %v504 = vmul.f32 %v416, %v503
        %vm505 = vcmp.eq.f32.partialorder %v416, inf
        %v506 = vsel %vm505, %v416, %v504
        %vm507 = vcmp.eq.f32.partialorder %v416, 0.0
        %v508 = vand.u32 %v416, 2147483648
        %v509 = vsel %vm507, %v508, %v506
        %v510 = vrsqrt.pop %v417
        %v511 = vmul.f32 %v510, %v417
        %v512 = vmul.f32 %v511, %v510
        %v513 = vmul.f32 0.5, %v512
        %v514 = vsub.f32 1.5, %v513
        %v515 = vmul.f32 %v510, %v514
        %v516 = vmul.f32 %v417, %v515
        %vm517 = vcmp.eq.f32.partialorder %v417, inf
        %v518 = vsel %vm517, %v417, %v516
        %vm519 = vcmp.eq.f32.partialorder %v417, 0.0
        %v520 = vand.u32 %v417, 2147483648
        %v521 = vsel %vm519, %v520, %v518
        %v522 = vrsqrt.pop %v418
        %v523 = vmul.f32 %v522, %v418
        %v524 = vmul.f32 %v523, %v522
        %v525 = vmul.f32 0.5, %v524
        %v526 = vsub.f32 1.5, %v525
        %v527 = vmul.f32 %v522, %v526
        %v528 = vmul.f32 %v418, %v527
        %vm529 = vcmp.eq.f32.partialorder %v418, inf
        %v530 = vsel %vm529, %v418, %v528
        %vm531 = vcmp.eq.f32.partialorder %v418, 0.0
        %v532 = vand.u32 %v418, 2147483648
        %v533 = vsel %vm531, %v532, %v530
        %v534 = vrsqrt.pop %v419
        %v535 = vmul.f32 %v534, %v419
        %v536 = vmul.f32 %v535, %v534
        %v537 = vmul.f32 0.5, %v536
        %v538 = vsub.f32 1.5, %v537
        %v539 = vmul.f32 %v534, %v538
        %v540 = vmul.f32 %v419, %v539
        %vm541 = vcmp.eq.f32.partialorder %v419, inf
        %v542 = vsel %vm541, %v419, %v540
        %vm543 = vcmp.eq.f32.partialorder %v419, 0.0
        %v544 = vand.u32 %v419, 2147483648
        %v545 = vsel %vm543, %v544, %v542
        %v546 = vrsqrt.pop %v420
        %v547 = vmul.f32 %v546, %v420
        %v548 = vmul.f32 %v547, %v546
        %v549 = vmul.f32 0.5, %v548
        %v550 = vsub.f32 1.5, %v549
        %v551 = vmul.f32 %v546, %v550
        %v552 = vmul.f32 %v420, %v551
        %vm553 = vcmp.eq.f32.partialorder %v420, inf
        %v554 = vsel %vm553, %v420, %v552
        %vm555 = vcmp.eq.f32.partialorder %v420, 0.0
        %v556 = vand.u32 %v420, 2147483648
        %v557 = vsel %vm555, %v556, %v554
        %v558 = vrsqrt.pop %v421
        %v559 = vmul.f32 %v558, %v421
        %v560 = vmul.f32 %v559, %v558
        %v561 = vmul.f32 0.5, %v560
        %v562 = vsub.f32 1.5, %v561
        %v563 = vmul.f32 %v558, %v562
        %v564 = vmul.f32 %v421, %v563
        %vm565 = vcmp.eq.f32.partialorder %v421, inf
        %v566 = vsel %vm565, %v421, %v564
        %vm567 = vcmp.eq.f32.partialorder %v421, 0.0
        %v568 = vand.u32 %v421, 2147483648
        %v569 = vsel %vm567, %v568, %v566
        %v570 = vrsqrt.pop %v422
        %v571 = vmul.f32 %v570, %v422
        %v572 = vmul.f32 %v571, %v570
        %v573 = vmul.f32 0.5, %v572
        %v574 = vsub.f32 1.5, %v573
        %v575 = vmul.f32 %v570, %v574
        %v576 = vmul.f32 %v422, %v575
        %vm577 = vcmp.eq.f32.partialorder %v422, inf
        %v578 = vsel %vm577, %v422, %v576
        %vm579 = vcmp.eq.f32.partialorder %v422, 0.0
        %v580 = vand.u32 %v422, 2147483648
        %v581 = vsel %vm579, %v580, %v578
        %v582 = vrsqrt.pop %v423
        %v583 = vmul.f32 %v582, %v423
        %v584 = vmul.f32 %v583, %v582
        %v585 = vmul.f32 0.5, %v584
        %v586 = vsub.f32 1.5, %v585
        %v587 = vmul.f32 %v582, %v586
        %v588 = vmul.f32 %v423, %v587
        %vm589 = vcmp.eq.f32.partialorder %v423, inf
        %v590 = vsel %vm589, %v423, %v588
        %vm591 = vcmp.eq.f32.partialorder %v423, 0.0
        %v592 = vand.u32 %v423, 2147483648
        %v593 = vsel %vm591, %v592, %v590
        %v594 = vrsqrt.pop %v424
        %v595 = vmul.f32 %v594, %v424
        %v596 = vmul.f32 %v595, %v594
        %v597 = vmul.f32 0.5, %v596
        %v598 = vsub.f32 1.5, %v597
        %v599 = vmul.f32 %v594, %v598
        %v600 = vmul.f32 %v424, %v599
        %vm601 = vcmp.eq.f32.partialorder %v424, inf
        %v602 = vsel %vm601, %v424, %v600
        %vm603 = vcmp.eq.f32.partialorder %v424, 0.0
        %v604 = vand.u32 %v424, 2147483648
        %v605 = vsel %vm603, %v604, %v602
        %v606 = vrsqrt.pop %v425
        %v607 = vmul.f32 %v606, %v425
        %v608 = vmul.f32 %v607, %v606
        %v609 = vmul.f32 0.5, %v608
        %v610 = vsub.f32 1.5, %v609
        %v611 = vmul.f32 %v606, %v610
        %v612 = vmul.f32 %v425, %v611
        %vm613 = vcmp.eq.f32.partialorder %v425, inf
        %v614 = vsel %vm613, %v425, %v612
        %vm615 = vcmp.eq.f32.partialorder %v425, 0.0
        %v616 = vand.u32 %v425, 2147483648
        %v617 = vsel %vm615, %v616, %v614
        %618 = vxpose.xlu0.b32.start [1/16] %v437, 128
        %619 = vxpose.xlu0.b32.cont [2/16] %v449, 128
        %620 = vxpose.xlu0.b32.cont [3/16] %v461, 128
        %621 = vxpose.xlu0.b32.cont [4/16] %v473, 128
        %622 = vxpose.xlu0.b32.cont [5/16] %v485, 128
        %623 = vxpose.xlu0.b32.cont [6/16] %v497, 128
        %624 = vxpose.xlu0.b32.cont [7/16] %v509, 128
        %625 = vxpose.xlu0.b32.cont [8/16] %v521, 128
        %626 = vxpose.xlu0.b32.cont [9/16] %v533, 128
        %627 = vxpose.xlu0.b32.cont [10/16] %v545, 128
        %628 = vxpose.xlu0.b32.cont [11/16] %v557, 128
        %629 = vxpose.xlu0.b32.cont [12/16] %v569, 128
        %630 = vxpose.xlu0.b32.cont [13/16] %v581, 128
        %631 = vxpose.xlu0.b32.cont [14/16] %v593, 128
        %632 = vxpose.xlu0.b32.cont [15/16] %v605, 128
        %633 = vxpose.xlu0.b32.end [16/16] %v617, 128
        %v634 = vpop.trf.xlu0
        %v635 = vpop.trf.xlu0
        %v636 = vpop.trf.xlu0
        %v637 = vpop.trf.xlu0
        %v638 = vpop.trf.xlu0
        %v639 = vpop.trf.xlu0
        %v640 = vpop.trf.xlu0
        %v641 = vpop.trf.xlu0
        %v642 = vpop.trf.xlu0
        %v643 = vpop.trf.xlu0
        %v644 = vpop.trf.xlu0
        %v645 = vpop.trf.xlu0
        %v646 = vpop.trf.xlu0
        %v647 = vpop.trf.xlu0
        %v648 = vpop.trf.xlu0
        %v649 = vpop.trf.xlu0
        %650 = vst [vmem:[%s198] sm:$0xff] %v634
        %651 = vst [vmem:[%s198 + $0x8] sm:$0xff] %v635
        %652 = vst [vmem:[%s198 + $0x10] sm:$0xff] %v636
        %653 = vst [vmem:[%s198 + $0x18] sm:$0xff] %v637
        %654 = vst [vmem:[%s198 + $0x20] sm:$0xff] %v638
        %655 = vst [vmem:[%s198 + $0x28] sm:$0xff] %v639
        %656 = vst [vmem:[%s198 + $0x30] sm:$0xff] %v640
        %657 = vst [vmem:[%s198 + $0x38] sm:$0xff] %v641
        %658 = vst [vmem:[%s198 + $0x40] sm:$0xff] %v642
        %659 = vst [vmem:[%s198 + $0x48] sm:$0xff] %v643
        %660 = vst [vmem:[%s198 + $0x50] sm:$0xff] %v644
        %661 = vst [vmem:[%s198 + $0x58] sm:$0xff] %v645
        %662 = vst [vmem:[%s198 + $0x60] sm:$0xff] %v646
        %663 = vst [vmem:[%s198 + $0x68] sm:$0xff] %v647
        %664 = vst [vmem:[%s198 + $0x70] sm:$0xff] %v648
        %665 = vst [vmem:[%s198 + $0x78] sm:$0xff] %v649
        %s666 = sand.u32 %s91, 1
        %s667 = scalar_lea.sflag [#allocation4], %s666
        %s668 = sand.u32 %s91, 1
        %s669 = smul.addr %s668, 128
        %s670 = scalar_lea.vmem [#allocation7], %s669
        // Predicated region
        $region37: #{tpu_custom_call.1} parent=27 // pred_check
          %p671 = pneg %p101
        $region38: #{tpu_custom_call.1} parent=27 // pred_check_branch
          %673 = sbr.rel (%p671) target = $region40
        $region39: #{tpu_custom_call.1} parent=27 // pred_region
          %675 = vsyncadd %s667, 0
          %s676 = smul.addr %s24, 16
          %s677 = sadd.s32 %s25, %s676
          %s678 = smul.addr %s677, 8
          %s679 = scalar_lea.hbm %s2, %s678
          %s680 = sshll.u32 %s670, 4
          %s681 = int_to_ptr.vmem [resolvable:$true] %s680
          %s682 = sshll.u32 %s679, 4
          %s683 = int_to_ptr.hbm [resolvable:$true] %s682
          %688 = dma.vmem_to_hbm [thread:$0]  %s681, 2048, %s683, %s667, 128, 128, 8
        $region40: #{tpu_custom_call.1} parent=27 // pred_fallthru
          _
      $region28: #{tpu_custom_call.1} parent=5 // pred_fallthru
        _
      %p689 = scmp.le.s32.totalorder 2, %s15
      // Predicated region
      $region41: #{tpu_custom_call.1} parent=5 // pred_check
        %p690 = pneg %p689
      $region42: #{tpu_custom_call.1} parent=5 // pred_check_branch
        %692 = sbr.rel (%p690) target = $region44
      $region43: #{tpu_custom_call.1} parent=5 // pred_region
        %s693 = ssub.s32 %s15, 2
        // Predicated region
        $region45: #{tpu_custom_call.1} parent=43 // pred_check
          %p694 = pneg %p107
        $region46: #{tpu_custom_call.1} parent=43 // pred_check_branch
          %696 = sbr.rel (%p694) target = $region48
        $region47: #{tpu_custom_call.1} parent=43 // pred_region
          %s697 = sand.u32 %s92, 1
          %s698 = scalar_lea.sflag [#allocation4], %s697
          %s699 = sand.u32 %s92, 1
          %s700 = smul.addr %s699, 128
          %s701 = scalar_lea.vmem [#allocation7], %s700
          %703 = dma.done %s698, 2048
        $region48: #{tpu_custom_call.1} parent=43 // pred_fallthru
          _
      $region44: #{tpu_custom_call.1} parent=5 // pred_fallthru
        _
    $region6: #{tpu_custom_call.1} parent=1 // loop_footer
      %s19 = sadd.s32 1, %s15
    $region7: #{tpu_custom_call.1} parent=1 // loop_footer_branch
      %14 = sbr.rel target = $region3
    $region8: #{tpu_custom_call.1} parent=1 // loop_exit
      _
    %704 = vsyncpa [#allocation3], 1
    %s705 = scalar_lea.sflag [#allocation3], 1
    %706 = vsyncpa %s705, 1
    %707 = vsyncpa [#allocation6], 1
    %708 = vsyncpa [#allocation4], 1
    %s709 = scalar_lea.sflag [#allocation4], 1
    %710 = vsyncpa %s709, 1

</llo_original>
